<compile_context>
chip_gen: v7x
topology: tpu7x:2x2x1
jax: 0.10.0
libtpu: 0.0.40
codegen_flags: <defaults>
</compile_context>

<pallas_src>
import jax
import jax.numpy as jnp
from jax.experimental import pallas as pl
from jax.experimental.pallas import tpu as pltpu

BN_EPS = 1e-5
D_IN = 5 * 36     # 180
D_H = 64

# Path-selection budgets (rows of the padded batch).
_FUSED_MAX_ROWS = 8192    # single-step path: x tile + activations < ~8 MiB VMEM
_STASH_MAX_ROWS = 49152   # 2-phase g-stash path: f32 g slab <= 12 MiB (v7x-safe)
_TILE_ROWS = 2048         # batch tile for the 2-phase paths


def _round_up(n, m):
    return ((n + m - 1) // m) * m


def _make_fused_kernel(batch, b_pad):
    """Single grid step: fc1 matmul + BN stats + folded BN/relu + fc2 + fc3."""
    inv_b = 1.0 / float(batch)

    def kernel(x_ref, w1_ref, pvec_ref, ps_ref, z_ref, out_ref):
        # fc1 WITHOUT the bias: a per-feature constant offset cancels exactly under
        # training-mode batch-norm.  x/w1 are bf16; MXU accumulates in f32.
        g = jnp.dot(x_ref[...], w1_ref[...], preferred_element_type=jnp.float32)

        # Batch statistics (mask batch-padding rows).  Mean-centered variance:
        # two VPU passes over the VMEM-resident g, avoids E[g^2]-E[g]^2 cancellation.
        row = jax.lax.broadcasted_iota(jnp.int32, (b_pad, 1), 0)
        valid = row < batch
        m1 = jnp.sum(jnp.where(valid, g, 0.0), axis=0, keepdims=True) * inv_b
        d = jnp.where(valid, g - m1, 0.0)
        var = jnp.sum(d * d, axis=0, keepdims=True) * inv_b

        gamma = pvec_ref[0:1, :]
        beta = pvec_ref[1:2, :]
        w2row = pvec_ref[2:3, :]
        scale = gamma * jax.lax.rsqrt(var + BN_EPS)      # rsqrt on EUP
        shift = beta - m1 * scale
        h = jnp.maximum(g * scale + shift, 0.0)          # fused BN + relu

        # fc2: VPU multiply + lane reduction (the (b_pad,)->(1,b_pad) relayout is a
        # single XLU pass per call; cheap relative to the matmul).
        y = jnp.sum(h * w2row, axis=1).reshape(1, b_pad)

        # fc3(z): Linear(1,1) == scalar multiply + bias (scalars read from SMEM).
        b2 = ps_ref[0]
        w3 = ps_ref[1]
        b3 = ps_ref[2]
        y = y + (b2 + b3) + w3 * z_ref[...]
        out_ref[...] = y.astype(out_ref.dtype)           # one lane-dense store

    return kernel


def _make_two_phase_kernel(batch, tile, stash):
    """grid = (phase, batch tile).

    Phase 0 streams x, runs fc1, accumulates BN sums (and, if `stash`, caches the
    fc1 activations in a persistent VMEM slab).  Phase 1 applies the folded
    BN + relu + fc2 (+ fc3) and writes one lane-dense output tile per step.
    """
    inv_b = 1.0 / float(batch)

    def kernel(x_ref, w1_ref, pvec_ref, ps_ref, z_ref, out_ref, stats_ref, *slab):
        phase = pl.program_id(0)   # 0 = accumulate batch stats, 1 = normalize + fc2
        t = pl.program_id(1)       # batch tile
        off = pl.multiple_of(t * tile, tile)

        @pl.when(phase == 0)
        def _():
            g = jnp.dot(x_ref[...], w1_ref[...], preferred_element_type=jnp.float32)

            @pl.when(t == 0)
            def _():
                stats_ref[...] = jnp.zeros_like(stats_ref)

            # Mask batch-padding rows so they do not pollute the batch statistics.
            row = jax.lax.broadcasted_iota(jnp.int32, (tile, 1), 0) + off
            gm = jnp.where(row < batch, g, 0.0)
            # TODO(synk): E[g^2]-E[g]^2 partial sums in f32; switch to Chan-combined
            # mean-centered partial sums if feature means ever dwarf their std.
            stats_ref[0:1, :] = stats_ref[0:1, :] + jnp.sum(gm, axis=0, keepdims=True)
            stats_ref[1:2, :] = stats_ref[1:2, :] + jnp.sum(gm * gm, axis=0, keepdims=True)
            if stash:
                # Cache fc1 activations so phase 1 never re-streams x / re-runs fc1.
                slab[0][pl.ds(off, tile), :] = g

        @pl.when(phase == 1)
        def _():
            if stash:
                g = slab[0][pl.ds(off, tile), :]
            else:
                g = jnp.dot(x_ref[...], w1_ref[...], preferred_element_type=jnp.float32)

            # Folded batch-norm: single scale/shift pass over the (tile, 64) block.
            m1 = stats_ref[0:1, :] * inv_b
            var = stats_ref[1:2, :] * inv_b - m1 * m1
            gamma = pvec_ref[0:1, :]
            beta = pvec_ref[1:2, :]
            w2row = pvec_ref[2:3, :]
            scale = gamma * jax.lax.rsqrt(var + BN_EPS)
            shift = beta - m1 * scale
            h = jnp.maximum(g * scale + shift, 0.0)

            y = jnp.sum(h * w2row, axis=1).reshape(1, tile)
            b2 = ps_ref[0]
            w3 = ps_ref[1]
            b3 = ps_ref[2]
            y = y + (b2 + b3) + w3 * z_ref[...]
            out_ref[...] = y.astype(out_ref.dtype)       # lane-dense (1, tile) store

    return kernel


def neural_net_forward(x, z, params, *, fused_rows_cap=_FUSED_MAX_ROWS,
                       stash_rows_cap=_STASH_MAX_ROWS):
    """x: (B, 180) f32, z: (B, 1) f32 or None.  Returns (B, 1) f32."""
    (w1t, b1, gamma, beta, w2t, b2, w3, b3) = params
    del b1  # cancels exactly under training-mode batch-norm (see kernel comment)
    B = x.shape[0]

    if z is None:
        # TODO(synk): the module's `z is None` branch skips fc3 entirely; emulate it
        # with z = 0 and zeroed fc3 weight/bias so no fc3 contribution is added.
        z_arr = jnp.zeros((B, 1), jnp.float32)
        w3_s = jnp.float32(0.0)
        b3_s = jnp.float32(0.0)
    else:
        z_arr = z.astype(jnp.float32)
        w3_s = w3.reshape(()).astype(jnp.float32)
        b3_s = b3.reshape(()).astype(jnp.float32)

    fused = B <= fused_rows_cap
    if fused:
        TB = max(128, _round_up(B, 128))
        B_pad = TB
    else:
        TB = _TILE_ROWS
        B_pad = _round_up(B, TB)
    n_tiles = B_pad // TB
    stash = (not fused) and (B_pad <= stash_rows_cap)

    # bf16 for the dominant HBM stream + native MXU rate; BN statistics stay f32.
    x_bf = x.astype(jnp.bfloat16)
    w1_bf = w1t.astype(jnp.bfloat16)
    if B_pad != B:
        x_bf = jnp.pad(x_bf, ((0, B_pad - B), (0, 0)))
        z_arr = jnp.pad(z_arr, ((0, B_pad - B), (0, 0)))
    z_row = z_arr.reshape(1, B_pad)     # lane-dense, same layout as the output

    # Packed (3, 64) parameter slab: [gamma ; beta ; w2 row]  -> one VMEM tile.
    pvec = jnp.concatenate(
        [gamma.reshape(1, D_H), beta.reshape(1, D_H), w2t.reshape(1, D_H)],
        axis=0).astype(jnp.float32)
    # Packed scalars for SMEM: [b2, w3, b3].
    pscal = jnp.stack([b2.reshape(()).astype(jnp.float32), w3_s, b3_s])

    if fused:
        kernel = _make_fused_kernel(B, B_pad)
        grid = (1,)
        in_specs = [
            pl.BlockSpec((B_pad, D_IN), lambda i: (0, 0)),        # x (whole batch)
            pl.BlockSpec((D_IN, D_H), lambda i: (0, 0)),          # w1^T
            pl.BlockSpec((3, D_H), lambda i: (0, 0)),             # gamma/beta/w2 row
            pl.BlockSpec(memory_space=pltpu.MemorySpace.SMEM),    # [b2, w3, b3]
            pl.BlockSpec((1, B_pad), lambda i: (0, 0)),           # z (lane-dense)
        ]
        out_spec = pl.BlockSpec((1, B_pad), lambda i: (0, 0))
        scratch = []
        dims = ("arbitrary",)
        x_passes = 1
        vmem_limit = None
    else:
        kernel = _make_two_phase_kernel(B, TB, stash)
        grid = (2, n_tiles)   # (phase, batch tile)
        if stash:
            x_map = lambda p, t: (t * (1 - p), 0)   # phase 1: stop streaming x
        else:
            x_map = lambda p, t: (t, 0)             # recompute path re-streams x
        in_specs = [
            pl.BlockSpec((TB, D_IN), x_map),                      # x (streamed)
            pl.BlockSpec((D_IN, D_H), lambda p, t: (0, 0)),       # w1^T (pinned)
            pl.BlockSpec((3, D_H), lambda p, t: (0, 0)),          # gamma/beta/w2 row
            pl.BlockSpec(memory_space=pltpu.MemorySpace.SMEM),    # [b2, w3, b3]
            pl.BlockSpec((1, TB), lambda p, t: (0, t * p)),       # z: idle in phase 0
        ]
        # Phase 0 keeps output block 0 selected (never written, no per-step HBM
        # writeback); phase 1 writes one lane-dense tile per step.
        out_spec = pl.BlockSpec((1, TB), lambda p, t: (0, t * p))
        scratch = [pltpu.VMEM((2, D_H), jnp.float32)]             # [sum ; sumsq]
        if stash:
            scratch.append(pltpu.VMEM((B_pad, D_H), jnp.float32))  # fc1 activations
        # Phase 0 must complete before phase 1 and the BN-stats scratch is a shared
        # accumulator, so both grid axes stay sequential.
        dims = ("arbitrary", "arbitrary")
        x_passes = 1 if stash else 2
        vmem_limit = 32 * 1024 * 1024

    cost = pl.CostEstimate(
        flops=x_passes * 2 * B_pad * D_IN * D_H + 10 * B_pad * D_H,
        transcendentals=D_H * n_tiles,
        bytes_accessed=(x_passes * B_pad * D_IN * 2 + D_IN * D_H * 2
                        + 2 * B_pad * 4 + (3 * D_H + 3) * 4),
    )

    cparams = {"dimension_semantics": dims}
    if vmem_limit is not None:
        cparams["vmem_limit_bytes"] = vmem_limit

    out = pl.pallas_call(
        kernel,
        out_shape=jax.ShapeDtypeStruct((1, B_pad), jnp.float32),
        grid_spec=pltpu.PrefetchScalarGridSpec(
            num_scalar_prefetch=0,
            grid=grid,
            in_specs=in_specs,
            out_specs=out_spec,
            scratch_shapes=scratch,
        ),
        compiler_params=pltpu.CompilerParams(**cparams),
        cost_estimate=cost,
    )(x_bf, w1_bf, pvec, pscal, z_row)

    return out.reshape(B_pad, 1)[:B]


def init_params(key):
    """Deterministic parameter init matching the PyTorch module's shapes."""
    k1, k2, k3, k4, k5, k6 = jax.random.split(key, 6)
    # fc1: Linear(180, 64) -> stored transposed (180, 64)
    w1t = jax.random.uniform(k1, (D_IN, D_H), jnp.float32, -0.07, 0.07)
    b1 = jax.random.uniform(k2, (1, D_H), jnp.float32, -0.07, 0.07)
    # bn1 affine params
    gamma = 1.0 + 0.1 * jax.random.normal(k3, (1, D_H), jnp.float32)
    beta = 0.1 * jax.random.normal(k4, (1, D_H), jnp.float32)
    # fc2: Linear(64, 1) -> stored transposed (64, 1)
    w2t = jax.random.uniform(k5, (D_H, 1), jnp.float32, -0.125, 0.125)
    b2 = jnp.full((1, 1), 0.01, jnp.float32)
    # fc3: Linear(1, 1)
    w3 = jnp.full((1, 1), 0.5, jnp.float32)
    b3 = 0.02 * jax.random.normal(k6, (1, 1), jnp.float32)
    return (w1t, b1, gamma, beta, w2t, b2, w3, b3)


def reference_forward(x, z, params):
    (w1t, b1, gamma, beta, w2t, b2, w3, b3) = params
    h = x @ w1t + b1
    mean = jnp.mean(h, axis=0, keepdims=True)
    var = jnp.mean((h - mean) ** 2, axis=0, keepdims=True)
    h = (h - mean) / jnp.sqrt(var + BN_EPS) * gamma + beta
    h = jnp.maximum(h, 0.0)
    y = h @ w2t + b2
    if z is not None:
        y = y + z * w3[0, 0] + b3
    return y


if __name__ == "__main__":
    key = jax.random.PRNGKey(0)
    kx, kz, kp = jax.random.split(key, 3)
    params = init_params(kp)

    # Small batch -> fused single-step kernel (the primary test case).
    B = 16
    x = jax.random.normal(kx, (B, D_IN), jnp.float32)   # one-hot-ish features, 5*36=180
    z = jax.random.normal(kz, (B, 1), jnp.float32)
    out = jax.block_until_ready(neural_net_forward(x, z, params))
    ref = reference_forward(x, z, params)
    assert out.shape == (B, 1)
    # bf16 fc1 inputs -> ~1e-2-level differences vs the f32 reference.
    assert jnp.allclose(out, ref, atol=3e-2, rtol=3e-2), "fused path mismatch"

    # Exercise the two-phase paths on a modest batch (forced past the fused cap).
    B2 = 5000
    x2 = jax.random.normal(jax.random.PRNGKey(1), (B2, D_IN), jnp.float32)
    z2 = jax.random.normal(jax.random.PRNGKey(2), (B2, 1), jnp.float32)
    ref2 = reference_forward(x2, z2, params)
    out2 = jax.block_until_ready(
        neural_net_forward(x2, z2, params, fused_rows_cap=0))                    # g-stash
    assert jnp.allclose(out2, ref2, atol=3e-2, rtol=3e-2), "stash path mismatch"
    out3 = jax.block_until_ready(
        neural_net_forward(x2, z2, params, fused_rows_cap=0, stash_rows_cap=0))  # recompute
    assert jnp.allclose(out3, ref2, atol=3e-2, rtol=3e-2), "recompute path mismatch"

    print("KERNEL_OK")
</pallas_src>

<mosaic_0001>
module attributes {stable_mosaic.version = 11 : i64} {
  func.func @kernel(%arg0: i32, %arg1: memref<128x180xbf16, #tpu.memory_space<vmem>>, %arg2: memref<180x64xbf16, #tpu.memory_space<vmem>>, %arg3: memref<3x64xf32, #tpu.memory_space<vmem>>, %arg4: memref<3xf32, #tpu.memory_space<smem>>, %arg5: memref<1x128xf32, #tpu.memory_space<vmem>>, %arg6: memref<1x128xf32, #tpu.memory_space<vmem>>) attributes {dimension_semantics = [#tpu.dimension_semantics<arbitrary>], iteration_bounds = array<i64: 1>, scalar_prefetch = 0 : i64, scratch_operands = 0 : i64, tpu.core_type = #tpu.core_type<tc>, window_params = [{pipeline_mode = #tpu.pipeline_mode<synchronous>, transform_indices = @transform_0, window_bounds = array<i64: 128, 180>}, {pipeline_mode = #tpu.pipeline_mode<synchronous>, transform_indices = @transform_1, window_bounds = array<i64: 180, 64>}, {pipeline_mode = #tpu.pipeline_mode<synchronous>, transform_indices = @transform_2, window_bounds = array<i64: 3, 64>}, {transform_indices = @transform_3, window_bounds = array<i64: 3>}, {pipeline_mode = #tpu.pipeline_mode<synchronous>, transform_indices = @transform_4, window_bounds = array<i64: 1, 128>}, {pipeline_mode = #tpu.pipeline_mode<synchronous>, transform_indices = @transform_5, window_bounds = array<i64: 1, 128>}]} {
    %c0 = arith.constant 0 : index
    %c0_0 = arith.constant 0 : index
    %0 = vector.load %arg1[%c0, %c0_0] : memref<128x180xbf16, #tpu.memory_space<vmem>>, vector<128x180xbf16>
    %c0_1 = arith.constant 0 : index
    %c0_2 = arith.constant 0 : index
    %1 = vector.load %arg2[%c0_1, %c0_2] : memref<180x64xbf16, #tpu.memory_space<vmem>>, vector<180x64xbf16>
    %cst = arith.constant dense<0.000000e+00> : vector<128x64xf32>
    %2 = tpu.matmul %0, %1, %cst {dimension_numbers = #tpu.dot_dimension_numbers<[1], [0], [0], [1], [0, 0, 1, 1], [], []>} : vector<128x180xbf16>, vector<180x64xbf16>, vector<128x64xf32> -> vector<128x64xf32>
    %3 = tpu.iota {dimensions = array<i32: 0>} : vector<128x1xi32>
    %c16_i32 = arith.constant 16 : i32
    %4 = vector.broadcast %c16_i32 : i32 to vector<128x1xi32>
    %5 = arith.cmpi slt, %3, %4 : vector<128x1xi32>
    %cst_3 = arith.constant 0.000000e+00 : f32
    %6 = vector.shape_cast %5 : vector<128x1xi1> to vector<128x1xi1>
    %7 = vector.broadcast %6 : vector<128x1xi1> to vector<128x64xi1>
    %8 = vector.broadcast %cst_3 : f32 to vector<128x64xf32>
    %9 = arith.select %7, %2, %8 : vector<128x64xi1>, vector<128x64xf32>
    %cst_4 = arith.constant dense<0.000000e+00> : vector<64xf32>
    %10 = vector.multi_reduction <add>, %9, %cst_4 [0] : vector<128x64xf32> to vector<64xf32>
    %11 = vector.shape_cast %10 : vector<64xf32> to vector<1x64xf32>
    %cst_5 = arith.constant 6.250000e-02 : f32
    %12 = vector.broadcast %cst_5 : f32 to vector<1x64xf32>
    %13 = arith.mulf %11, %12 : vector<1x64xf32>
    %14 = vector.broadcast %13 : vector<1x64xf32> to vector<128x64xf32>
    %15 = arith.subf %2, %14 : vector<128x64xf32>
    %cst_6 = arith.constant 0.000000e+00 : f32
    %16 = vector.shape_cast %5 : vector<128x1xi1> to vector<128x1xi1>
    %17 = vector.broadcast %16 : vector<128x1xi1> to vector<128x64xi1>
    %18 = vector.broadcast %cst_6 : f32 to vector<128x64xf32>
    %19 = arith.select %17, %15, %18 : vector<128x64xi1>, vector<128x64xf32>
    %20 = arith.mulf %19, %19 : vector<128x64xf32>
    %cst_7 = arith.constant dense<0.000000e+00> : vector<64xf32>
    %21 = vector.multi_reduction <add>, %20, %cst_7 [0] : vector<128x64xf32> to vector<64xf32>
    %22 = vector.shape_cast %21 : vector<64xf32> to vector<1x64xf32>
    %cst_8 = arith.constant 6.250000e-02 : f32
    %23 = vector.broadcast %cst_8 : f32 to vector<1x64xf32>
    %24 = arith.mulf %22, %23 : vector<1x64xf32>
    %c0_9 = arith.constant 0 : index
    %c0_10 = arith.constant 0 : index
    %25 = vector.load %arg3[%c0_9, %c0_10] : memref<3x64xf32, #tpu.memory_space<vmem>>, vector<1x64xf32>
    %c1 = arith.constant 1 : index
    %c0_11 = arith.constant 0 : index
    %26 = vector.load %arg3[%c1, %c0_11] : memref<3x64xf32, #tpu.memory_space<vmem>>, vector<1x64xf32>
    %c2 = arith.constant 2 : index
    %c0_12 = arith.constant 0 : index
    %27 = vector.load %arg3[%c2, %c0_12] : memref<3x64xf32, #tpu.memory_space<vmem>>, vector<1x64xf32>
    %cst_13 = arith.constant 9.99999974E-6 : f32
    %28 = vector.broadcast %cst_13 : f32 to vector<1x64xf32>
    %29 = arith.addf %24, %28 : vector<1x64xf32>
    %30 = math.rsqrt %29 : vector<1x64xf32>
    %31 = arith.mulf %25, %30 : vector<1x64xf32>
    %32 = arith.mulf %13, %31 : vector<1x64xf32>
    %33 = arith.subf %26, %32 : vector<1x64xf32>
    %34 = vector.broadcast %31 : vector<1x64xf32> to vector<128x64xf32>
    %35 = arith.mulf %2, %34 : vector<128x64xf32>
    %36 = vector.broadcast %33 : vector<1x64xf32> to vector<128x64xf32>
    %37 = arith.addf %35, %36 : vector<128x64xf32>
    %cst_14 = arith.constant 0.000000e+00 : f32
    %38 = vector.broadcast %cst_14 : f32 to vector<128x64xf32>
    %39 = arith.maximumf %37, %38 : vector<128x64xf32>
    %40 = vector.broadcast %27 : vector<1x64xf32> to vector<128x64xf32>
    %41 = arith.mulf %39, %40 : vector<128x64xf32>
    %cst_15 = arith.constant dense<0.000000e+00> : vector<128xf32>
    %42 = vector.multi_reduction <add>, %41, %cst_15 [1] : vector<128x64xf32> to vector<128xf32>
    %43 = vector.shape_cast %42 : vector<128xf32> to vector<1x128xf32>
    %c0_16 = arith.constant 0 : index
    %44 = memref.load %arg4[%c0_16] : memref<3xf32, #tpu.memory_space<smem>>
    %c1_17 = arith.constant 1 : index
    %45 = memref.load %arg4[%c1_17] : memref<3xf32, #tpu.memory_space<smem>>
    %c2_18 = arith.constant 2 : index
    %46 = memref.load %arg4[%c2_18] : memref<3xf32, #tpu.memory_space<smem>>
    %47 = arith.addf %44, %46 : f32
    %48 = vector.broadcast %47 : f32 to vector<1x128xf32>
    %49 = arith.addf %43, %48 : vector<1x128xf32>
    %c0_19 = arith.constant 0 : index
    %c0_20 = arith.constant 0 : index
    %50 = vector.load %arg5[%c0_19, %c0_20] : memref<1x128xf32, #tpu.memory_space<vmem>>, vector<1x128xf32>
    %51 = vector.broadcast %45 : f32 to vector<1x128xf32>
    %52 = arith.mulf %51, %50 : vector<1x128xf32>
    %53 = arith.addf %49, %52 : vector<1x128xf32>
    %c0_21 = arith.constant 0 : index
    %c0_22 = arith.constant 0 : index
    %54 = vector.load %arg6[%c0_21, %c0_22] : memref<1x128xf32, #tpu.memory_space<vmem>>, vector<1x128xf32>
    tpu.vector_store %arg6[%c0_21, %c0_22], %53 {strides = array<i32>} : memref<1x128xf32, #tpu.memory_space<vmem>>, vector<1x128xf32>,
    return
  }
  func.func @transform_0(%arg0: i32) -> (i32, i32) {
    %c0_i32 = arith.constant 0 : i32
    %c0_i32_0 = arith.constant 0 : i32
    %c0_i32_1 = arith.constant 0 : i32
    return %c0_i32, %c0_i32_0 : i32, i32
  }
  func.func @transform_1(%arg0: i32) -> (i32, i32) {
    %c0_i32 = arith.constant 0 : i32
    %c0_i32_0 = arith.constant 0 : i32
    %c0_i32_1 = arith.constant 0 : i32
    return %c0_i32, %c0_i32_0 : i32, i32
  }
  func.func @transform_2(%arg0: i32) -> (i32, i32) {
    %c0_i32 = arith.constant 0 : i32
    %c0_i32_0 = arith.constant 0 : i32
    %c0_i32_1 = arith.constant 0 : i32
    return %c0_i32, %c0_i32_0 : i32, i32
  }
  func.func @transform_3(%arg0: i32) -> i32 {
    %c0_i32 = arith.constant 0 : i32
    %c0_i32_0 = arith.constant 0 : i32
    return %c0_i32 : i32
  }
  func.func @transform_4(%arg0: i32) -> (i32, i32) {
    %c0_i32 = arith.constant 0 : i32
    %c0_i32_0 = arith.constant 0 : i32
    %c0_i32_1 = arith.constant 0 : i32
    return %c0_i32, %c0_i32_0 : i32, i32
  }
  func.func @transform_5(%arg0: i32) -> (i32, i32) {
    %c0_i32 = arith.constant 0 : i32
    %c0_i32_0 = arith.constant 0 : i32
    %c0_i32_1 = arith.constant 0 : i32
    return %c0_i32, %c0_i32_0 : i32, i32
  }
}

</mosaic_0001>

<llo_original>
// kernel: tpu_custom_call.1
$region0: #{tpu_custom_call.1}
  #allocation0 [shape = 'u32[]', space=smem, size = 0x4, offset = 0x4, fixed_abs, tag = 'smem constant byte address 0x4 - core index']
  #allocation1 [shape = 'u32[144,128]{1,0:T(1,128)}', space=vmem, size = 0x12000, scoped, tag = 'internal scratch']
  %s0 = inlined_call_operand.vmem [shape: bf16[128,180], index: 0, kind: input, shape index: {}]
  %s1 = inlined_call_operand.vmem [shape: bf16[180,64], index: 1, kind: input, shape index: {}]
  %s2 = inlined_call_operand.vmem [shape: f32[3,64], index: 2, kind: input, shape index: {}]
  %s3 = inlined_call_operand.vmem [shape: f32[3], index: 3, kind: input, shape index: {}]
  %s4 = inlined_call_operand.vmem [shape: f32[1,128], index: 4, kind: input, shape index: {}]
  %s5 = inlined_call_operand.hbm [shape: f32[1,128], index: 5, kind: output, shape index: {}]
  %s6 = sld [smem:[#allocation0]]
  $region34: #{tpu_custom_call.1} parent=0
    _
  %s8 = ssub.s32 1, %s6
  %s9 = scalar_select 0, %s8, %s6
  $region1: #{tpu_custom_call.1} parent=0
    #allocation2 [shape = 'u8[512]{0}', space=smem, size = 0x200, scoped, tag = 'input window, operand 3, single buffered']
    #allocation3 [shape = 's32[1]{0}', space=sflag, size = 0x4, scoped, tag = 'scoped memory for tpu_custom_call.1']
    #allocation4 [shape = 's32[1]{0}', space=sflag, size = 0x4, scoped, tag = 'scoped memory for tpu_custom_call.1']
    #allocation5 [shape = 'u8[512]{0}', space=vmem, size = 0x400, scoped, tag = 'output window, operand 0, single buffered']
    %10 = vsyncpa [#allocation4], 0
    %11 = vsyncpa [#allocation3], 0
    // Predicated region
    $region2: #{tpu_custom_call.1} parent=1 // pred_check
      _
    $region3: #{tpu_custom_call.1} parent=1 // pred_check_branch
      %13 = sbr.rel (0) target = $region5
    $region4: #{tpu_custom_call.1} parent=1 // pred_region
      _
    $region5: #{tpu_custom_call.1} parent=1 // pred_fallthru
      _
    // Predicated region
    $region6: #{tpu_custom_call.1} parent=1 // pred_check
      _
    $region7: #{tpu_custom_call.1} parent=1 // pred_check_branch
      %15 = sbr.rel (0) target = $region9
    $region8: #{tpu_custom_call.1} parent=1 // pred_region
      _
    $region9: #{tpu_custom_call.1} parent=1 // pred_fallthru
      _
    // Predicated region
    $region10: #{tpu_custom_call.1} parent=1 // pred_check
      _
    $region11: #{tpu_custom_call.1} parent=1 // pred_check_branch
      %17 = sbr.rel (0) target = $region13
    $region12: #{tpu_custom_call.1} parent=1 // pred_region
      _
    $region13: #{tpu_custom_call.1} parent=1 // pred_fallthru
      _
    // Predicated region
    $region14: #{tpu_custom_call.1} parent=1 // pred_check
      _
    $region15: #{tpu_custom_call.1} parent=1 // pred_check_branch
      %19 = sbr.rel (0) target = $region17
    $region16: #{tpu_custom_call.1} parent=1 // pred_region
      %s21 = ssub.s32 16, 16
      %22 = vsyncadd [#allocation4], %s21
      %s24 = sshll.u32 %s3, 4
      %s25 = int_to_ptr.vmem [resolvable:$true] %s24
      %27 = dma.vmem_to_smem %s25, 16, [#allocation2], [#allocation4]
    $region17: #{tpu_custom_call.1} parent=1 // pred_fallthru
      _
    // Predicated region
    $region18: #{tpu_custom_call.1} parent=1 // pred_check
      _
    $region19: #{tpu_custom_call.1} parent=1 // pred_check_branch
      %29 = sbr.rel (0) target = $region21
    $region20: #{tpu_custom_call.1} parent=1 // pred_region
      _
    $region21: #{tpu_custom_call.1} parent=1 // pred_fallthru
      _
    // Predicated region
    $region22: #{tpu_custom_call.1} parent=1 // pred_check
      _
    $region23: #{tpu_custom_call.1} parent=1 // pred_check_branch
      %31 = sbr.rel (0) target = $region25
    $region24: #{tpu_custom_call.1} parent=1 // pred_region
      %32 = dma.done [#allocation4], 16
    $region25: #{tpu_custom_call.1} parent=1 // pred_fallthru
      _
    %33 = sfence
    %v35 = vld [vmem:[%s0] sm:$0xff]
    %v36 = vld [vmem:[%s0 + $0x8] sm:$0xff]
    %v37 = vld [vmem:[%s0 + $0x10] sm:$0xff]
    %v38 = vld [vmem:[%s0 + $0x18] sm:$0xff]
    %v39 = vld [vmem:[%s0 + $0x20] sm:$0xff]
    %v40 = vld [vmem:[%s0 + $0x28] sm:$0xff]
    %v41 = vld [vmem:[%s0 + $0x30] sm:$0xff]
    %v42 = vld [vmem:[%s0 + $0x38] sm:$0xff]
    %v43 = vld [vmem:[%s0 + $0x40] sm:$0xff]
    %v44 = vld [vmem:[%s0 + $0x48] sm:$0xff]
    %v45 = vld [vmem:[%s0 + $0x50] sm:$0xff]
    %v46 = vld [vmem:[%s0 + $0x58] sm:$0xff]
    %v47 = vld [vmem:[%s0 + $0x60] sm:$0xff]
    %v48 = vld [vmem:[%s0 + $0x68] sm:$0xff]
    %v49 = vld [vmem:[%s0 + $0x70] sm:$0xff]
    %v50 = vld [vmem:[%s0 + $0x78] sm:$0xff]
    %v51 = vld [vmem:[%s1] sm:$0xf]
    %v52 = vld [vmem:[%s1 + $0x4] sm:$0xf]
    %v53 = vld [vmem:[%s1 + $0x8] sm:$0xf]
    %v54 = vld [vmem:[%s1 + $0xc] sm:$0xf]
    %v55 = vld [vmem:[%s1 + $0x10] sm:$0xf]
    %v56 = vld [vmem:[%s1 + $0x14] sm:$0xf]
    %v57 = vld [vmem:[%s1 + $0x18] sm:$0xf]
    %v58 = vld [vmem:[%s1 + $0x1c] sm:$0xf]
    %v59 = vld [vmem:[%s1 + $0x20] sm:$0xf]
    %v60 = vld [vmem:[%s1 + $0x24] sm:$0xf]
    %v61 = vld [vmem:[%s1 + $0x28] sm:$0xf]
    %v62 = vld [vmem:[%s1 + $0x2c] sm:$0xf]
    %v63 = vld [vmem:[%s1 + $0x30] sm:$0xf]
    %v64 = vld [vmem:[%s1 + $0x34] sm:$0xf]
    %v65 = vld [vmem:[%s1 + $0x38] sm:$0xf]
    %v66 = vld [vmem:[%s1 + $0x3c] sm:$0xf]
    %v67 = vld [vmem:[%s1 + $0x40] sm:$0xf]
    %v68 = vld [vmem:[%s1 + $0x44] sm:$0xf]
    %v69 = vld [vmem:[%s1 + $0x48] sm:$0xf]
    %v70 = vld [vmem:[%s1 + $0x4c] sm:$0xf]
    %v71 = vld [vmem:[%s1 + $0x50] sm:$0xf]
    %v72 = vld [vmem:[%s1 + $0x54] sm:$0xf]
    %v73 = vld [vmem:[%s1 + $0x58] sm:$0x3]
    %v90 = vunpack.c.l.b16 %v35
    %v91 = vunpack.c.h.b16 %v35
    %v92 = vunpack.c.l.b16 %v36
    %v93 = vunpack.c.h.b16 %v36
    %v94 = vunpack.c.l.b16 %v37
    %v95 = vunpack.c.h.b16 %v37
    %v96 = vunpack.c.l.b16 %v38
    %v97 = vunpack.c.h.b16 %v38
    %v98 = vunpack.c.l.b16 %v39
    %v99 = vunpack.c.h.b16 %v39
    %v100 = vunpack.c.l.b16 %v40
    %v101 = vunpack.c.h.b16 %v40
    %v102 = vunpack.c.l.b16 %v41
    %v103 = vunpack.c.h.b16 %v41
    %v104 = vunpack.c.l.b16 %v42
    %v105 = vunpack.c.h.b16 %v42
    %v106 = vunpack.c.l.b16 %v43
    %v107 = vunpack.c.h.b16 %v43
    %v108 = vunpack.c.l.b16 %v44
    %v109 = vunpack.c.h.b16 %v44
    %v110 = vunpack.c.l.b16 %v45
    %v111 = vunpack.c.h.b16 %v45
    %v112 = vunpack.c.l.b16 %v46
    %v113 = vunpack.c.h.b16 %v46
    %v114 = vunpack.c.l.b16 %v47
    %v115 = vunpack.c.h.b16 %v47
    %v116 = vunpack.c.l.b16 %v48
    %v117 = vunpack.c.h.b16 %v48
    %v118 = vunpack.c.l.b16 %v49
    %v119 = vunpack.c.h.b16 %v49
    %v120 = vunpack.c.l.b16 %v50
    %v121 = vunpack.c.h.b16 %v50
    %v122 = vpack.c.b16 %v92, %v90
    %v123 = vpack.c.b16 %v93, %v91
    %v124 = vpack.c.b16 %v96, %v94
    %v125 = vpack.c.b16 %v97, %v95
    %v126 = vpack.c.b16 %v100, %v98
    %v127 = vpack.c.b16 %v101, %v99
    %v128 = vpack.c.b16 %v104, %v102
    %v129 = vpack.c.b16 %v105, %v103
    %v130 = vpack.c.b16 %v108, %v106
    %v131 = vpack.c.b16 %v109, %v107
    %v132 = vpack.c.b16 %v112, %v110
    %v133 = vpack.c.b16 %v113, %v111
    %v134 = vpack.c.b16 %v116, %v114
    %v135 = vpack.c.b16 %v117, %v115
    %v136 = vpack.c.b16 %v120, %v118
    %v137 = vpack.c.b16 %v121, %v119
    %v169 = vunpack.c.l.b16 %v51
    %v170 = vunpack.c.l.b16 %v52
    %v171 = vunpack.c.l.b16 %v53
    %v172 = vunpack.c.l.b16 %v54
    %v173 = vunpack.c.l.b16 %v55
    %v174 = vunpack.c.l.b16 %v56
    %v175 = vunpack.c.l.b16 %v57
    %v176 = vunpack.c.l.b16 %v58
    %v177 = vunpack.c.l.b16 %v59
    %v178 = vunpack.c.l.b16 %v60
    %v179 = vunpack.c.l.b16 %v61
    %v180 = vunpack.c.l.b16 %v62
    %v181 = vunpack.c.l.b16 %v63
    %v182 = vunpack.c.l.b16 %v64
    %v183 = vunpack.c.l.b16 %v65
    %v184 = vunpack.c.l.b16 %v66
    %v185 = vunpack.c.l.b16 %v67
    %v186 = vunpack.c.l.b16 %v68
    %v187 = vunpack.c.l.b16 %v69
    %v188 = vunpack.c.l.b16 %v70
    %v189 = vunpack.c.l.b16 %v71
    %v190 = vunpack.c.l.b16 %v72
    %v191 = vunpack.c.l.b16 %v73
    %v192 = vpack.c.b16 %v170, %v169
    %v193 = vpack.c.b16 %v172, %v171
    %v194 = vpack.c.b16 %v174, %v173
    %v195 = vpack.c.b16 %v176, %v175
    %v196 = vpack.c.b16 %v178, %v177
    %v197 = vpack.c.b16 %v180, %v179
    %v198 = vpack.c.b16 %v182, %v181
    %v199 = vpack.c.b16 %v184, %v183
    %v200 = vpack.c.b16 %v186, %v185
    %v201 = vpack.c.b16 %v188, %v187
    %v202 = vpack.c.b16 %v190, %v189
    %v203 = vpack.c.b16 %v191, %v191
    %vm215 = vcmask 424960
    %v217 = vsel %vm215, %v123, 0
    %v220 = vsel %vm215, %v125, 0
    %v223 = vsel %vm215, %v127, 0
    %v226 = vsel %vm215, %v129, 0
    %v229 = vsel %vm215, %v131, 0
    %v232 = vsel %vm215, %v133, 0
    %v235 = vsel %vm215, %v135, 0
    %v238 = vsel %vm215, %v137, 0
    %vm240 = vcmask 1041408
    %v242 = vsel %vm240, %v203, 0
    %244 = vmatprep.subr.bf16.mxu0 0
    %245 = vmatpush1.bf16.msra.mxu0 %v192
    %246 = vmatprep.subr.bf16.mxu0 0
    %247 = vmatpush1.bf16.msra.mxu0 %v193
    %248 = vmatprep.subr.bf16.mxu0 0
    %249 = vmatpush1.bf16.msra.mxu0 %v194
    %250 = vmatprep.subr.bf16.mxu0 0
    %251 = vmatpush1.bf16.msra.mxu0 %v195
    %252 = vmatprep.subr.bf16.mxu0 0
    %253 = vmatpush1.bf16.msra.mxu0 %v196
    %254 = vmatprep.subr.bf16.mxu0 0
    %255 = vmatpush1.bf16.msra.mxu0 %v197
    %256 = vmatprep.subr.bf16.mxu0 0
    %257 = vmatpush1.bf16.msra.mxu0 %v198
    %258 = vmatprep.subr.bf16.mxu0 0
    %259 = vmatpush1.bf16.msra.mxu0 %v199
    %260 = vmatprep.subr.bf16.mxu0 0
    %261 = vmatpush1.bf16.msra.mxu0 %v200
    %262 = vmatprep.subr.bf16.mxu0 0
    %263 = vmatpush1.bf16.msra.mxu0 %v201
    %264 = vmatprep.subr.bf16.mxu0 0
    %265 = vmatpush1.bf16.msra.mxu0 %v202
    %266 = vmatprep.subr.bf16.mxu0 0
    %267 = vmatpush1.bf16.msra.mxu0 %v242
    %268 = vmatprep.subr.bf16.mxu0 0
    %269 = vmatpush1.bf16.msra.mxu0 0
    %270 = vmatprep.subr.bf16.mxu0 0
    %271 = vmatpush1.bf16.msra.mxu0 0
    %272 = vmatprep.subr.bf16.mxu0 0
    %273 = vmatpush1.bf16.msra.mxu0 0
    %274 = vmatprep.subr.bf16.mxu0 0
    %275 = vmatpush1.bf16.msra.mxu0 0
    %276 = vmatprep.mubr.bf16.mxu0 %v217
    %277 = vmatmul.mubr.bf16.gmra.mrb[0].mxu0 %v122
    %v278 = vpop.f32.mrb[0].mxu0
    %v279 = vadd.f32 0.0, %v278
    %v280 = vpop.f32.mrb[0].mxu0
    %v281 = vpop.f32.mrb[0].mxu0
    %v282 = vadd.f32 0.0, %v281
    %v283 = vpop.f32.mrb[0].mxu0
    %284 = vmatprep.mubr.bf16.mxu0 %v220
    %285 = vmatmul.mubr.bf16.gmra.mrb[0].mxu0 %v124
    %v286 = vpop.f32.mrb[0].mxu0
    %v287 = vadd.f32 0.0, %v286
    %v288 = vpop.f32.mrb[0].mxu0
    %v289 = vpop.f32.mrb[0].mxu0
    %v290 = vadd.f32 0.0, %v289
    %v291 = vpop.f32.mrb[0].mxu0
    %292 = vmatprep.mubr.bf16.mxu0 %v223
    %293 = vmatmul.mubr.bf16.gmra.mrb[0].mxu0 %v126
    %v294 = vpop.f32.mrb[0].mxu0
    %v295 = vadd.f32 0.0, %v294
    %v296 = vpop.f32.mrb[0].mxu0
    %v297 = vpop.f32.mrb[0].mxu0
    %v298 = vadd.f32 0.0, %v297
    %v299 = vpop.f32.mrb[0].mxu0
    %300 = vmatprep.mubr.bf16.mxu0 %v226
    %301 = vmatmul.mubr.bf16.gmra.mrb[0].mxu0 %v128
    %v302 = vpop.f32.mrb[0].mxu0
    %v303 = vadd.f32 0.0, %v302
    %v304 = vpop.f32.mrb[0].mxu0
    %v305 = vpop.f32.mrb[0].mxu0
    %v306 = vadd.f32 0.0, %v305
    %v307 = vpop.f32.mrb[0].mxu0
    %308 = vmatprep.mubr.bf16.mxu0 %v229
    %309 = vmatmul.mubr.bf16.gmra.mrb[0].mxu0 %v130
    %v310 = vpop.f32.mrb[0].mxu0
    %v311 = vadd.f32 0.0, %v310
    %v312 = vpop.f32.mrb[0].mxu0
    %v313 = vpop.f32.mrb[0].mxu0
    %v314 = vadd.f32 0.0, %v313
    %v315 = vpop.f32.mrb[0].mxu0
    %316 = vmatprep.mubr.bf16.mxu0 %v232
    %317 = vmatmul.mubr.bf16.gmra.mrb[0].mxu0 %v132
    %v318 = vpop.f32.mrb[0].mxu0
    %v319 = vadd.f32 0.0, %v318
    %v320 = vpop.f32.mrb[0].mxu0
    %v321 = vpop.f32.mrb[0].mxu0
    %v322 = vadd.f32 0.0, %v321
    %v323 = vpop.f32.mrb[0].mxu0
    %324 = vmatprep.mubr.bf16.mxu0 %v235
    %325 = vmatmul.mubr.bf16.gmra.mrb[0].mxu0 %v134
    %v326 = vpop.f32.mrb[0].mxu0
    %v327 = vadd.f32 0.0, %v326
    %v328 = vpop.f32.mrb[0].mxu0
    %v329 = vpop.f32.mrb[0].mxu0
    %v330 = vadd.f32 0.0, %v329
    %v331 = vpop.f32.mrb[0].mxu0
    %332 = vmatprep.mubr.bf16.mxu0 %v238
    %333 = vmatmul.mubr.bf16.gmra.mrb[0].mxu0 %v136
    %v334 = vpop.f32.mrb[0].mxu0
    %v335 = vadd.f32 0.0, %v334
    %v336 = vpop.f32.mrb[0].mxu0
    %v337 = vpop.f32.mrb[0].mxu0
    %v338 = vadd.f32 0.0, %v337
    %v339 = vpop.f32.mrb[0].mxu0
    %340 = vdwg.mxu0
    %v341 = vlaneseq
    %v342 = vshrl.u32 %v341, 7
    %v343 = vadd.s32 %v342, 8
    %v344 = vadd.s32 %v342, 16
    %v345 = vadd.s32 %v342, 24
    %v346 = vadd.s32 %v342, 32
    %v347 = vadd.s32 %v342, 40
    %v348 = vadd.s32 %v342, 48
    %v349 = vadd.s32 %v342, 56
    %v350 = vadd.s32 %v342, 64
    %v351 = vadd.s32 %v342, 72
    %v352 = vadd.s32 %v342, 80
    %v353 = vadd.s32 %v342, 88
    %v354 = vadd.s32 %v342, 96
    %v355 = vadd.s32 %v342, 104
    %v356 = vadd.s32 %v342, 112
    %v357 = vadd.s32 %v342, 120
    %vm358 = vcmp.lt.s32.totalorder %v342, 16
    %vm359 = vcmp.lt.s32.totalorder %v343, 16
    %vm360 = vcmp.lt.s32.totalorder %v344, 16
    %vm361 = vcmp.lt.s32.totalorder %v345, 16
    %vm362 = vcmp.lt.s32.totalorder %v346, 16
    %vm363 = vcmp.lt.s32.totalorder %v347, 16
    %vm364 = vcmp.lt.s32.totalorder %v348, 16
    %vm365 = vcmp.lt.s32.totalorder %v349, 16
    %vm366 = vcmp.lt.s32.totalorder %v350, 16
    %vm367 = vcmp.lt.s32.totalorder %v351, 16
    %vm368 = vcmp.lt.s32.totalorder %v352, 16
    %vm369 = vcmp.lt.s32.totalorder %v353, 16
    %vm370 = vcmp.lt.s32.totalorder %v354, 16
    %vm371 = vcmp.lt.s32.totalorder %v355, 16
    %vm372 = vcmp.lt.s32.totalorder %v356, 16
    %vm373 = vcmp.lt.s32.totalorder %v357, 16
    %v374 = vsel %vm358, 1, 0
    %v375 = vsel %vm359, 1, 0
    %v376 = vsel %vm360, 1, 0
    %v377 = vsel %vm361, 1, 0
    %v378 = vsel %vm362, 1, 0
    %v379 = vsel %vm363, 1, 0
    %v380 = vsel %vm364, 1, 0
    %v381 = vsel %vm365, 1, 0
    %v382 = vsel %vm366, 1, 0
    %v383 = vsel %vm367, 1, 0
    %v384 = vsel %vm368, 1, 0
    %v385 = vsel %vm369, 1, 0
    %v386 = vsel %vm370, 1, 0
    %v387 = vsel %vm371, 1, 0
    %v388 = vsel %vm372, 1, 0
    %v389 = vsel %vm373, 1, 0
    %vm390 = vcmp.eq.s32.totalorder %v374, 1
    %vm391 = vcmp.eq.s32.totalorder %v375, 1
    %vm392 = vcmp.eq.s32.totalorder %v376, 1
    %vm393 = vcmp.eq.s32.totalorder %v377, 1
    %vm394 = vcmp.eq.s32.totalorder %v378, 1
    %vm395 = vcmp.eq.s32.totalorder %v379, 1
    %vm396 = vcmp.eq.s32.totalorder %v380, 1
    %vm397 = vcmp.eq.s32.totalorder %v381, 1
    %vm398 = vcmp.eq.s32.totalorder %v382, 1
    %vm399 = vcmp.eq.s32.totalorder %v383, 1
    %vm400 = vcmp.eq.s32.totalorder %v384, 1
    %vm401 = vcmp.eq.s32.totalorder %v385, 1
    %vm402 = vcmp.eq.s32.totalorder %v386, 1
    %vm403 = vcmp.eq.s32.totalorder %v387, 1
    %vm404 = vcmp.eq.s32.totalorder %v388, 1
    %vm405 = vcmp.eq.s32.totalorder %v389, 1
    %v406 = vsel %vm390, %v279, 0.0
    %v407 = vsel %vm391, %v282, 0.0
    %v408 = vsel %vm392, %v287, 0.0
    %v409 = vsel %vm393, %v290, 0.0
    %v410 = vsel %vm394, %v295, 0.0
    %v411 = vsel %vm395, %v298, 0.0
    %v412 = vsel %vm396, %v303, 0.0
    %v413 = vsel %vm397, %v306, 0.0
    %v414 = vsel %vm398, %v311, 0.0
    %v415 = vsel %vm399, %v314, 0.0
    %v416 = vsel %vm400, %v319, 0.0
    %v417 = vsel %vm401, %v322, 0.0
    %v418 = vsel %vm402, %v327, 0.0
    %v419 = vsel %vm403, %v330, 0.0
    %v420 = vsel %vm404, %v335, 0.0
    %v421 = vsel %vm405, %v338, 0.0
    %vm422 = vcmask 523264
    %v423 = vsel %vm422, %v406, 0.0
    %v424 = vsel %vm422, %v407, 0.0
    %v425 = vadd.f32 %v423, %v424
    %v426 = vsel %vm422, %v408, 0.0
    %v427 = vadd.f32 %v425, %v426
    %v428 = vsel %vm422, %v409, 0.0
    %v429 = vadd.f32 %v427, %v428
    %v430 = vsel %vm422, %v410, 0.0
    %v431 = vadd.f32 %v429, %v430
    %v432 = vsel %vm422, %v411, 0.0
    %v433 = vadd.f32 %v431, %v432
    %v434 = vsel %vm422, %v412, 0.0
    %v435 = vadd.f32 %v433, %v434
    %v436 = vsel %vm422, %v413, 0.0
    %v437 = vadd.f32 %v435, %v436
    %v438 = vsel %vm422, %v414, 0.0
    %v439 = vadd.f32 %v437, %v438
    %v440 = vsel %vm422, %v415, 0.0
    %v441 = vadd.f32 %v439, %v440
    %v442 = vsel %vm422, %v416, 0.0
    %v443 = vadd.f32 %v441, %v442
    %v444 = vsel %vm422, %v417, 0.0
    %v445 = vadd.f32 %v443, %v444
    %v446 = vsel %vm422, %v418, 0.0
    %v447 = vadd.f32 %v445, %v446
    %v448 = vsel %vm422, %v419, 0.0
    %v449 = vadd.f32 %v447, %v448
    %v450 = vsel %vm422, %v420, 0.0
    %v451 = vadd.f32 %v449, %v450
    %v452 = vsel %vm422, %v421, 0.0
    %v453 = vadd.f32 %v451, %v452
    %v454 = vrot.slane %v453, 4
    %v455 = vadd.f32 %v453, %v454
    %v456 = vrot.slane %v455, 2
    %v457 = vadd.f32 %v455, %v456
    %v458 = vrot.slane %v457, 1
    %v459 = vadd.f32 %v457, %v458
    %v460 = vmul.f32 %v459, 0.0625
    %v461 = vsub.f32 %v279, %v460
    %v462 = vsub.f32 %v282, %v460
    %v463 = vsub.f32 %v287, %v460
    %v464 = vsub.f32 %v290, %v460
    %v465 = vsub.f32 %v295, %v460
    %v466 = vsub.f32 %v298, %v460
    %v467 = vsub.f32 %v303, %v460
    %v468 = vsub.f32 %v306, %v460
    %v469 = vsub.f32 %v311, %v460
    %v470 = vsub.f32 %v314, %v460
    %v471 = vsub.f32 %v319, %v460
    %v472 = vsub.f32 %v322, %v460
    %v473 = vsub.f32 %v327, %v460
    %v474 = vsub.f32 %v330, %v460
    %v475 = vsub.f32 %v335, %v460
    %v476 = vsub.f32 %v338, %v460
    %v477 = vsel %vm390, %v461, 0.0
    %v478 = vsel %vm391, %v462, 0.0
    %v479 = vsel %vm392, %v463, 0.0
    %v480 = vsel %vm393, %v464, 0.0
    %v481 = vsel %vm394, %v465, 0.0
    %v482 = vsel %vm395, %v466, 0.0
    %v483 = vsel %vm396, %v467, 0.0
    %v484 = vsel %vm397, %v468, 0.0
    %v485 = vsel %vm398, %v469, 0.0
    %v486 = vsel %vm399, %v470, 0.0
    %v487 = vsel %vm400, %v471, 0.0
    %v488 = vsel %vm401, %v472, 0.0
    %v489 = vsel %vm402, %v473, 0.0
    %v490 = vsel %vm403, %v474, 0.0
    %v491 = vsel %vm404, %v475, 0.0
    %v492 = vsel %vm405, %v476, 0.0
    %v493 = vmul.f32 %v477, %v477
    %v494 = vmul.f32 %v478, %v478
    %v495 = vmul.f32 %v479, %v479
    %v496 = vmul.f32 %v480, %v480
    %v497 = vmul.f32 %v481, %v481
    %v498 = vmul.f32 %v482, %v482
    %v499 = vmul.f32 %v483, %v483
    %v500 = vmul.f32 %v484, %v484
    %v501 = vmul.f32 %v485, %v485
    %v502 = vmul.f32 %v486, %v486
    %v503 = vmul.f32 %v487, %v487
    %v504 = vmul.f32 %v488, %v488
    %v505 = vmul.f32 %v489, %v489
    %v506 = vmul.f32 %v490, %v490
    %v507 = vmul.f32 %v491, %v491
    %v508 = vmul.f32 %v492, %v492
    %v509 = vsel %vm422, %v493, 0.0
    %v510 = vsel %vm422, %v494, 0.0
    %v511 = vadd.f32 %v509, %v510
    %v512 = vsel %vm422, %v495, 0.0
    %v513 = vadd.f32 %v511, %v512
    %v514 = vsel %vm422, %v496, 0.0
    %v515 = vadd.f32 %v513, %v514
    %v516 = vsel %vm422, %v497, 0.0
    %v517 = vadd.f32 %v515, %v516
    %v518 = vsel %vm422, %v498, 0.0
    %v519 = vadd.f32 %v517, %v518
    %v520 = vsel %vm422, %v499, 0.0
    %v521 = vadd.f32 %v519, %v520
    %v522 = vsel %vm422, %v500, 0.0
    %v523 = vadd.f32 %v521, %v522
    %v524 = vsel %vm422, %v501, 0.0
    %v525 = vadd.f32 %v523, %v524
    %v526 = vsel %vm422, %v502, 0.0
    %v527 = vadd.f32 %v525, %v526
    %v528 = vsel %vm422, %v503, 0.0
    %v529 = vadd.f32 %v527, %v528
    %v530 = vsel %vm422, %v504, 0.0
    %v531 = vadd.f32 %v529, %v530
    %v532 = vsel %vm422, %v505, 0.0
    %v533 = vadd.f32 %v531, %v532
    %v534 = vsel %vm422, %v506, 0.0
    %v535 = vadd.f32 %v533, %v534
    %v536 = vsel %vm422, %v507, 0.0
    %v537 = vadd.f32 %v535, %v536
    %v538 = vsel %vm422, %v508, 0.0
    %v539 = vadd.f32 %v537, %v538
    %v540 = vrot.slane %v539, 4
    %v541 = vadd.f32 %v539, %v540
    %v542 = vrot.slane %v541, 2
    %v543 = vadd.f32 %v541, %v542
    %v544 = vrot.slane %v543, 1
    %v545 = vadd.f32 %v543, %v544
    %v546 = vmul.f32 %v545, 0.0625
    %v547 = vld [vmem:[%s2] sm:$0x1]
    %v548 = vld [vmem:[%s2 + $0x1] sm:$0x1]
    %v549 = vld [vmem:[%s2 + $0x2] sm:$0x1]
    %v550 = vadd.f32 %v546, 1e-05
    %v551 = vrsqrt.pop %v550
    %v552 = vmul.f32 %v547, %v551
    %v553 = vmul.f32 %v460, %v552
    %v554 = vsub.f32 %v548, %v553
    %v555 = vlaneseq
    %v556 = vshrl.u32 %v555, 7
    %v557 = vsub.s32 0, %v556
    %v558 = vrot.slane %v552, %v557
    %v559 = vmul.f32 %v279, %v558
    %v560 = vmul.f32 %v282, %v558
    %v561 = vmul.f32 %v287, %v558
    %v562 = vmul.f32 %v290, %v558
    %v563 = vmul.f32 %v295, %v558
    %v564 = vmul.f32 %v298, %v558
    %v565 = vmul.f32 %v303, %v558
    %v566 = vmul.f32 %v306, %v558
    %v567 = vmul.f32 %v311, %v558
    %v568 = vmul.f32 %v314, %v558
    %v569 = vmul.f32 %v319, %v558
    %v570 = vmul.f32 %v322, %v558
    %v571 = vmul.f32 %v327, %v558
    %v572 = vmul.f32 %v330, %v558
    %v573 = vmul.f32 %v335, %v558
    %v574 = vmul.f32 %v338, %v558
    %v575 = vlaneseq
    %v576 = vshrl.u32 %v575, 7
    %v577 = vsub.s32 0, %v576
    %v578 = vrot.slane %v554, %v577
    %v579 = vadd.f32 %v559, %v578
    %v580 = vadd.f32 %v560, %v578
    %v581 = vadd.f32 %v561, %v578
    %v582 = vadd.f32 %v562, %v578
    %v583 = vadd.f32 %v563, %v578
    %v584 = vadd.f32 %v564, %v578
    %v585 = vadd.f32 %v565, %v578
    %v586 = vadd.f32 %v566, %v578
    %v587 = vadd.f32 %v567, %v578
    %v588 = vadd.f32 %v568, %v578
    %v589 = vadd.f32 %v569, %v578
    %v590 = vadd.f32 %v570, %v578
    %v591 = vadd.f32 %v571, %v578
    %v592 = vadd.f32 %v572, %v578
    %v593 = vadd.f32 %v573, %v578
    %v594 = vadd.f32 %v574, %v578
    %v595 = vmax.f32 %v579, 0.0
    %v596 = vmax.f32 %v580, 0.0
    %v597 = vmax.f32 %v581, 0.0
    %v598 = vmax.f32 %v582, 0.0
    %v599 = vmax.f32 %v583, 0.0
    %v600 = vmax.f32 %v584, 0.0
    %v601 = vmax.f32 %v585, 0.0
    %v602 = vmax.f32 %v586, 0.0
    %v603 = vmax.f32 %v587, 0.0
    %v604 = vmax.f32 %v588, 0.0
    %v605 = vmax.f32 %v589, 0.0
    %v606 = vmax.f32 %v590, 0.0
    %v607 = vmax.f32 %v591, 0.0
    %v608 = vmax.f32 %v592, 0.0
    %v609 = vmax.f32 %v593, 0.0
    %v610 = vmax.f32 %v594, 0.0
    %v611 = vlaneseq
    %v612 = vshrl.u32 %v611, 7
    %v613 = vsub.s32 0, %v612
    %v614 = vrot.slane %v549, %v613
    %v615 = vmul.f32 %v595, %v614
    %v616 = vmul.f32 %v596, %v614
    %v617 = vmul.f32 %v597, %v614
    %v618 = vmul.f32 %v598, %v614
    %v619 = vmul.f32 %v599, %v614
    %v620 = vmul.f32 %v600, %v614
    %v621 = vmul.f32 %v601, %v614
    %v622 = vmul.f32 %v602, %v614
    %v623 = vmul.f32 %v603, %v614
    %v624 = vmul.f32 %v604, %v614
    %v625 = vmul.f32 %v605, %v614
    %v626 = vmul.f32 %v606, %v614
    %v627 = vmul.f32 %v607, %v614
    %v628 = vmul.f32 %v608, %v614
    %v629 = vmul.f32 %v609, %v614
    %v630 = vmul.f32 %v610, %v614
    %v631 = vsel %vm422, %v615, 0.0
    %632 = vadd.xlane.f32.xlu0 %v631
    %v633 = vpop.xlane.xlu0 %632
    %v634 = vsel %vm422, %v616, 0.0
    %635 = vadd.xlane.f32.xlu0 %v634
    %v636 = vpop.xlane.xlu0 %635
    %v637 = vsel %vm422, %v617, 0.0
    %638 = vadd.xlane.f32.xlu0 %v637
    %v639 = vpop.xlane.xlu0 %638
    %v640 = vsel %vm422, %v618, 0.0
    %641 = vadd.xlane.f32.xlu0 %v640
    %v642 = vpop.xlane.xlu0 %641
    %v643 = vsel %vm422, %v619, 0.0
    %644 = vadd.xlane.f32.xlu0 %v643
    %v645 = vpop.xlane.xlu0 %644
    %v646 = vsel %vm422, %v620, 0.0
    %647 = vadd.xlane.f32.xlu0 %v646
    %v648 = vpop.xlane.xlu0 %647
    %v649 = vsel %vm422, %v621, 0.0
    %650 = vadd.xlane.f32.xlu0 %v649
    %v651 = vpop.xlane.xlu0 %650
    %v652 = vsel %vm422, %v622, 0.0
    %653 = vadd.xlane.f32.xlu0 %v652
    %v654 = vpop.xlane.xlu0 %653
    %v655 = vsel %vm422, %v623, 0.0
    %656 = vadd.xlane.f32.xlu0 %v655
    %v657 = vpop.xlane.xlu0 %656
    %v658 = vsel %vm422, %v624, 0.0
    %659 = vadd.xlane.f32.xlu0 %v658
    %v660 = vpop.xlane.xlu0 %659
    %v661 = vsel %vm422, %v625, 0.0
    %662 = vadd.xlane.f32.xlu0 %v661
    %v663 = vpop.xlane.xlu0 %662
    %v664 = vsel %vm422, %v626, 0.0
    %665 = vadd.xlane.f32.xlu0 %v664
    %v666 = vpop.xlane.xlu0 %665
    %v667 = vsel %vm422, %v627, 0.0
    %668 = vadd.xlane.f32.xlu0 %v667
    %v669 = vpop.xlane.xlu0 %668
    %v670 = vsel %vm422, %v628, 0.0
    %671 = vadd.xlane.f32.xlu0 %v670
    %v672 = vpop.xlane.xlu0 %671
    %v673 = vsel %vm422, %v629, 0.0
    %674 = vadd.xlane.f32.xlu0 %v673
    %v675 = vpop.xlane.xlu0 %674
    %v676 = vsel %vm422, %v630, 0.0
    %677 = vadd.xlane.f32.xlu0 %v676
    %v678 = vpop.xlane.xlu0 %677
    %s679 = sld [smem:[#allocation2]]
    %s680 = sld [smem:[#allocation2 + $0x1]]
    %s681 = sld [smem:[#allocation2 + $0x2]]
    %s682 = sadd.f32 %s679, %s681
    %v683 = vstv %s682
    %v684 = vadd.f32 %v633, %v683
    %v685 = vadd.f32 %v636, %v683
    %v686 = vadd.f32 %v639, %v683
    %v687 = vadd.f32 %v642, %v683
    %v688 = vadd.f32 %v645, %v683
    %v689 = vadd.f32 %v648, %v683
    %v690 = vadd.f32 %v651, %v683
    %v691 = vadd.f32 %v654, %v683
    %v692 = vadd.f32 %v657, %v683
    %v693 = vadd.f32 %v660, %v683
    %v694 = vadd.f32 %v663, %v683
    %v695 = vadd.f32 %v666, %v683
    %v696 = vadd.f32 %v669, %v683
    %v697 = vadd.f32 %v672, %v683
    %v698 = vadd.f32 %v675, %v683
    %v699 = vadd.f32 %v678, %v683
    %v700 = vld [vmem:[%s4] sm:$0x1]
    %v701 = vstv %s680
    %v702 = vmul.f32 %v701, %v700
    %v704 = vlaneseq
    %v705 = vshrl.u32 %v704, 7
    %v706 = vsub.s32 0, %v705
    %v707 = vrot.slane %v702, %v706
    %709 = vbcast.lane.b32.xlu0 %v707, 256
    %v710 = vpop.permute.xlu0 %709
    %s712 = sor.u32 256, 8
    %713 = vbcast.lane.b32.xlu0 %v707, %s712
    %v714 = vpop.permute.xlu0 %713
    %s716 = sor.u32 256, 16
    %717 = vbcast.lane.b32.xlu0 %v707, %s716
    %v718 = vpop.permute.xlu0 %717
    %s720 = sor.u32 256, 24
    %721 = vbcast.lane.b32.xlu0 %v707, %s720
    %v722 = vpop.permute.xlu0 %721
    %s724 = sor.u32 256, 32
    %725 = vbcast.lane.b32.xlu0 %v707, %s724
    %v726 = vpop.permute.xlu0 %725
    %s728 = sor.u32 256, 40
    %729 = vbcast.lane.b32.xlu0 %v707, %s728
    %v730 = vpop.permute.xlu0 %729
    %s732 = sor.u32 256, 48
    %733 = vbcast.lane.b32.xlu0 %v707, %s732
    %v734 = vpop.permute.xlu0 %733
    %s736 = sor.u32 256, 56
    %737 = vbcast.lane.b32.xlu0 %v707, %s736
    %v738 = vpop.permute.xlu0 %737
    %s740 = sor.u32 256, 64
    %741 = vbcast.lane.b32.xlu0 %v707, %s740
    %v742 = vpop.permute.xlu0 %741
    %s744 = sor.u32 256, 72
    %745 = vbcast.lane.b32.xlu0 %v707, %s744
    %v746 = vpop.permute.xlu0 %745
    %s748 = sor.u32 256, 80
    %749 = vbcast.lane.b32.xlu0 %v707, %s748
    %v750 = vpop.permute.xlu0 %749
    %s752 = sor.u32 256, 88
    %753 = vbcast.lane.b32.xlu0 %v707, %s752
    %v754 = vpop.permute.xlu0 %753
    %s756 = sor.u32 256, 96
    %757 = vbcast.lane.b32.xlu0 %v707, %s756
    %v758 = vpop.permute.xlu0 %757
    %s760 = sor.u32 256, 104
    %761 = vbcast.lane.b32.xlu0 %v707, %s760
    %v762 = vpop.permute.xlu0 %761
    %s764 = sor.u32 256, 112
    %765 = vbcast.lane.b32.xlu0 %v707, %s764
    %v766 = vpop.permute.xlu0 %765
    %s768 = sor.u32 256, 120
    %769 = vbcast.lane.b32.xlu0 %v707, %s768
    %v770 = vpop.permute.xlu0 %769
    %v787 = vadd.f32 %v684, %v710
    %v788 = vadd.f32 %v685, %v714
    %v789 = vadd.f32 %v686, %v718
    %v790 = vadd.f32 %v687, %v722
    %v791 = vadd.f32 %v688, %v726
    %v792 = vadd.f32 %v689, %v730
    %v793 = vadd.f32 %v690, %v734
    %v794 = vadd.f32 %v691, %v738
    %v795 = vadd.f32 %v692, %v742
    %v796 = vadd.f32 %v693, %v746
    %v797 = vadd.f32 %v694, %v750
    %v798 = vadd.f32 %v695, %v754
    %v799 = vadd.f32 %v696, %v758
    %v800 = vadd.f32 %v697, %v762
    %v801 = vadd.f32 %v698, %v766
    %v802 = vadd.f32 %v699, %v770
    %819 = vset.pattern.permute.xlu0 0
    %820 = vperm.xlu0 %819, %v787
    %v821 = vpop.permute.xlu0 %820
    %822 = vset.pattern.permute.xlu0 0
    %823 = vperm.xlu0 %822, %v788
    %v824 = vpop.permute.xlu0 %823
    %825 = vset.pattern.permute.xlu0 0
    %826 = vperm.xlu0 %825, %v789
    %v827 = vpop.permute.xlu0 %826
    %828 = vset.pattern.permute.xlu0 0
    %829 = vperm.xlu0 %828, %v790
    %v830 = vpop.permute.xlu0 %829
    %831 = vset.pattern.permute.xlu0 0
    %832 = vperm.xlu0 %831, %v791
    %v833 = vpop.permute.xlu0 %832
    %834 = vset.pattern.permute.xlu0 0
    %835 = vperm.xlu0 %834, %v792
    %v836 = vpop.permute.xlu0 %835
    %837 = vset.pattern.permute.xlu0 0
    %838 = vperm.xlu0 %837, %v793
    %v839 = vpop.permute.xlu0 %838
    %840 = vset.pattern.permute.xlu0 0
    %841 = vperm.xlu0 %840, %v794
    %v842 = vpop.permute.xlu0 %841
    %843 = vset.pattern.permute.xlu0 0
    %844 = vperm.xlu0 %843, %v795
    %v845 = vpop.permute.xlu0 %844
    %846 = vset.pattern.permute.xlu0 0
    %847 = vperm.xlu0 %846, %v796
    %v848 = vpop.permute.xlu0 %847
    %849 = vset.pattern.permute.xlu0 0
    %850 = vperm.xlu0 %849, %v797
    %v851 = vpop.permute.xlu0 %850
    %852 = vset.pattern.permute.xlu0 0
    %853 = vperm.xlu0 %852, %v798
    %v854 = vpop.permute.xlu0 %853
    %855 = vset.pattern.permute.xlu0 0
    %856 = vperm.xlu0 %855, %v799
    %v857 = vpop.permute.xlu0 %856
    %858 = vset.pattern.permute.xlu0 0
    %859 = vperm.xlu0 %858, %v800
    %v860 = vpop.permute.xlu0 %859
    %861 = vset.pattern.permute.xlu0 0
    %862 = vperm.xlu0 %861, %v801
    %v863 = vpop.permute.xlu0 %862
    %864 = vset.pattern.permute.xlu0 0
    %865 = vperm.xlu0 %864, %v802
    %v866 = vpop.permute.xlu0 %865
    %v867 = vlaneseq
    %v868 = vand.u32 %v867, 127
    %v869 = vlaneseq
    %v870 = vshrl.u32 %v869, 7
    %v871 = vsub.s32 %v868, %v870
    %v872 = vrot.slane %v821, %v871
    %v873 = vadd.s32 %v868, 4294967288
    %v874 = vlaneseq
    %v875 = vshrl.u32 %v874, 7
    %v876 = vsub.s32 %v873, %v875
    %v877 = vrot.slane %v824, %v876
    %vm878 = vcmask 130112
    %v879 = vsel %vm878, %v877, %v872
    %v880 = vadd.s32 %v868, 4294967280
    %v881 = vlaneseq
    %v882 = vshrl.u32 %v881, 7
    %v883 = vsub.s32 %v880, %v882
    %v884 = vrot.slane %v827, %v883
    %vm885 = vcmask 195712
    %v886 = vsel %vm885, %v884, %v879
    %v887 = vadd.s32 %v868, 4294967272
    %v888 = vlaneseq
    %v889 = vshrl.u32 %v888, 7
    %v890 = vsub.s32 %v887, %v889
    %v891 = vrot.slane %v830, %v890
    %vm892 = vcmask 261312
    %v893 = vsel %vm892, %v891, %v886
    %v894 = vadd.s32 %v868, 4294967264
    %v895 = vlaneseq
    %v896 = vshrl.u32 %v895, 7
    %v897 = vsub.s32 %v894, %v896
    %v898 = vrot.slane %v833, %v897
    %vm899 = vcmask 326912
    %v900 = vsel %vm899, %v898, %v893
    %v901 = vadd.s32 %v868, 4294967256
    %v902 = vlaneseq
    %v903 = vshrl.u32 %v902, 7
    %v904 = vsub.s32 %v901, %v903
    %v905 = vrot.slane %v836, %v904
    %vm906 = vcmask 392512
    %v907 = vsel %vm906, %v905, %v900
    %v908 = vadd.s32 %v868, 4294967248
    %v909 = vlaneseq
    %v910 = vshrl.u32 %v909, 7
    %v911 = vsub.s32 %v908, %v910
    %v912 = vrot.slane %v839, %v911
    %vm913 = vcmask 458112
    %v914 = vsel %vm913, %v912, %v907
    %v915 = vadd.s32 %v868, 4294967240
    %v916 = vlaneseq
    %v917 = vshrl.u32 %v916, 7
    %v918 = vsub.s32 %v915, %v917
    %v919 = vrot.slane %v842, %v918
    %vm920 = vcmask 523712
    %v921 = vsel %vm920, %v919, %v914
    %v922 = vadd.s32 %v868, 4294967232
    %v923 = vlaneseq
    %v924 = vshrl.u32 %v923, 7
    %v925 = vsub.s32 %v922, %v924
    %v926 = vrot.slane %v845, %v925
    %vm927 = vcmask 589312
    %v928 = vsel %vm927, %v926, %v921
    %v929 = vadd.s32 %v868, 4294967224
    %v930 = vlaneseq
    %v931 = vshrl.u32 %v930, 7
    %v932 = vsub.s32 %v929, %v931
    %v933 = vrot.slane %v848, %v932
    %vm934 = vcmask 654912
    %v935 = vsel %vm934, %v933, %v928
    %v936 = vadd.s32 %v868, 4294967216
    %v937 = vlaneseq
    %v938 = vshrl.u32 %v937, 7
    %v939 = vsub.s32 %v936, %v938
    %v940 = vrot.slane %v851, %v939
    %vm941 = vcmask 720512
    %v942 = vsel %vm941, %v940, %v935
    %v943 = vadd.s32 %v868, 4294967208
    %v944 = vlaneseq
    %v945 = vshrl.u32 %v944, 7
    %v946 = vsub.s32 %v943, %v945
    %v947 = vrot.slane %v854, %v946
    %vm948 = vcmask 786112
    %v949 = vsel %vm948, %v947, %v942
    %v950 = vadd.s32 %v868, 4294967200
    %v951 = vlaneseq
    %v952 = vshrl.u32 %v951, 7
    %v953 = vsub.s32 %v950, %v952
    %v954 = vrot.slane %v857, %v953
    %vm955 = vcmask 851712
    %v956 = vsel %vm955, %v954, %v949
    %v957 = vadd.s32 %v868, 4294967192
    %v958 = vlaneseq
    %v959 = vshrl.u32 %v958, 7
    %v960 = vsub.s32 %v957, %v959
    %v961 = vrot.slane %v860, %v960
    %vm962 = vcmask 917312
    %v963 = vsel %vm962, %v961, %v956
    %v964 = vadd.s32 %v868, 4294967184
    %v965 = vlaneseq
    %v966 = vshrl.u32 %v965, 7
    %v967 = vsub.s32 %v964, %v966
    %v968 = vrot.slane %v863, %v967
    %vm969 = vcmask 982912
    %v970 = vsel %vm969, %v968, %v963
    %v971 = vadd.s32 %v868, 4294967176
    %v972 = vlaneseq
    %v973 = vshrl.u32 %v972, 7
    %v974 = vsub.s32 %v971, %v973
    %v975 = vrot.slane %v866, %v974
    %vm976 = vcmask 1048512
    %v977 = vsel %vm976, %v975, %v970
    %979 = vst [vmem:[#allocation5] sm:$0x1] %v977
    // Predicated region
    $region26: #{tpu_custom_call.1} parent=1 // pred_check
      _
    $region27: #{tpu_custom_call.1} parent=1 // pred_check_branch
      %981 = sbr.rel (0) target = $region29
    $region28: #{tpu_custom_call.1} parent=1 // pred_region
      %s983 = ssub.s32 16, 16
      %984 = vsyncadd [#allocation3], %s983
      %s986 = sshll.u32 [#allocation5], 4
      %s987 = int_to_ptr.vmem [resolvable:$true] %s986
      %989 = dma.vmem_to_hbm [thread:$0]  %s987, 16, %s5, [#allocation3]
    $region29: #{tpu_custom_call.1} parent=1 // pred_fallthru
      _
    // Predicated region
    $region30: #{tpu_custom_call.1} parent=1 // pred_check
      _
    $region31: #{tpu_custom_call.1} parent=1 // pred_check_branch
      %991 = sbr.rel (0) target = $region33
    $region32: #{tpu_custom_call.1} parent=1 // pred_region
      %992 = dma.done [#allocation3], 16
    $region33: #{tpu_custom_call.1} parent=1 // pred_fallthru
      _
    %993 = vsyncpa [#allocation3], 1
    %994 = vsyncpa [#allocation4], 1

</llo_original>
